<compile_context>
chip_gen: v6e
topology: v6e:2x2x1
jax: 0.10.0
libtpu: 0.0.40
codegen_flags: <defaults>
</compile_context>

<pallas_src>
import functools
import math

import jax
import jax.numpy as jnp
from jax.experimental import pallas as pl
from jax.experimental.pallas import tpu as pltpu

_LANE = 128        # lane width (last dim of a vreg)
_SUBLANE = 8       # sublane width for f32 (second-to-last dim)
_MAX_BATCH_TILE = 2048


def _round_up(n, m):
    return ((n + m - 1) // m) * m


# -----------------------------------------------------------------------------
# Fused MLP kernel: the full [Linear -> Sigmoid]* -> Linear network.
#   refs = (x_ref, w0, b0, w1, b1, ..., w_{L-1}, b_{L-1}, o_ref)
#   x_ref : (TB, D0)            VMEM  f32   (batch tile, UNpadded input feats)
#   w_i   : (Din_i, Dout_i)     VMEM  bf16  (pre-transposed; hidden dims padded
#                                            to 128 lanes, first K / last N
#                                            left unpadded)
#   b_i   : (1, Dout_i)         VMEM  f32
#   o_ref : (TB, Dout_last)     VMEM  f32   (UNpadded output feats)
# -----------------------------------------------------------------------------
def _mlp_kernel(*refs, n_layers):
    x_ref = refs[0]
    o_ref = refs[-1]
    h = x_ref[...].astype(jnp.float32)
    for i in range(n_layers):
        w = refs[1 + 2 * i][...]            # bf16
        b = refs[2 + 2 * i][...]            # f32
        # bf16 operands -> MXU, f32 accumulate.
        h = jnp.dot(h.astype(jnp.bfloat16), w,
                    preferred_element_type=jnp.float32) + b
        if i != n_layers - 1:
            # nn.Sigmoid: sigmoid(x) == 0.5*tanh(0.5*x)+0.5 (EUP, no divide).
            # Keep f32 for the elementwise path (v5e VPU/EUP are f32-only).
            h = 0.5 * jnp.tanh(0.5 * h) + 0.5
    o_ref[...] = h.astype(o_ref.dtype)


# -----------------------------------------------------------------------------
# Parameter init (deterministic, mimicking nn.Linear's U(-1/sqrt(fan_in), ...)).
# Stored in the PyTorch (out, in) convention — converted ONCE by prepare_params.
# -----------------------------------------------------------------------------
def init_params(layer_sizes, key):
    params = []
    for i in range(len(layer_sizes) - 1):
        fan_in, fan_out = layer_sizes[i], layer_sizes[i + 1]
        key, kw, kb = jax.random.split(key, 3)
        bound = 1.0 / math.sqrt(fan_in)
        w = jax.random.uniform(kw, (fan_out, fan_in), jnp.float32,
                               minval=-bound, maxval=bound)
        b = jax.random.uniform(kb, (fan_out,), jnp.float32,
                               minval=-bound, maxval=bound)
        params.append((w, b))
    return params


def prepare_params(params):
    """One-time prep: transpose to (Din, Dout), cast weights to bf16, and pad
    only the *hidden* feature dims to 128 lanes.

    - First layer keeps K = input_dim unpadded (matches the unpadded x tile).
    - Last layer keeps N = out_dim unpadded (kernel writes only real outputs).
    - Zero-padded weight rows guarantee the 0.5 values that appear in padded
      activation lanes (sigmoid(0)) never leak into real output columns.
    """
    prepped = []
    n = len(params)
    for idx, (w, b) in enumerate(params):
        dout, din = w.shape
        din_p = din if idx == 0 else _round_up(din, _LANE)
        dout_p = dout if idx == n - 1 else _round_up(dout, _LANE)
        w_t = jnp.zeros((din_p, dout_p), jnp.bfloat16)
        w_t = w_t.at[:din, :dout].set(w.T.astype(jnp.bfloat16))
        b_p = jnp.zeros((1, dout_p), jnp.float32).at[0, :dout].set(b)
        prepped.append((w_t, b_p))
    return prepped


def _choose_batch_tiling(B):
    """Pick (batch_tile, padded_batch). Tile is a multiple of 8, capped at
    _MAX_BATCH_TILE, split into >=2 grid steps when possible (v7x megacore),
    and shrunk so batch-pad waste stays <= ~12.5%."""
    b8 = _round_up(max(B, _SUBLANE), _SUBLANE)
    tb = min(_MAX_BATCH_TILE, b8)
    if b8 > _SUBLANE:
        half = _round_up(-(-b8 // 2), _SUBLANE)
        tb = min(tb, max(_SUBLANE, half))
    while tb > _SUBLANE and (_round_up(b8, tb) - b8) * 8 > b8:
        tb = max(_SUBLANE, _round_up(tb // 2, _SUBLANE))
    b_pad = _round_up(b8, tb)
    return tb, b_pad


# -----------------------------------------------------------------------------
# Forward pass: one fused pallas_call for the whole network.
# -----------------------------------------------------------------------------
def _bpnn_forward_impl(prepped_params, x):
    B, d0 = x.shape
    n_layers = len(prepped_params)
    assert prepped_params[0][0].shape[0] == d0, "input dim mismatch"
    out_dim = prepped_params[-1][0].shape[1]

    tb, b_pad = _choose_batch_tiling(B)
    # Only pad batch rows (cheap; feature dim stays unpadded). Skip entirely
    # when the batch already divides the tile.
    x_in = x if b_pad == B else jnp.pad(x, ((0, b_pad - B), (0, 0)))

    flat_params = []
    # Input: batch-tiled, feature dim == full array dim (no lane padding).
    in_specs = [pl.BlockSpec((tb, d0), lambda i: (i, 0))]
    for w_t, b_v in prepped_params:
        flat_params.extend([w_t, b_v])
        # Constant block index across the batch grid -> stays VMEM-resident.
        in_specs.append(pl.BlockSpec(w_t.shape, lambda i: (0, 0)))
        in_specs.append(pl.BlockSpec(b_v.shape, lambda i: (0, 0)))

    kernel = functools.partial(_mlp_kernel, n_layers=n_layers)
    out = pl.pallas_call(
        kernel,
        out_shape=jax.ShapeDtypeStruct((b_pad, out_dim), x.dtype),
        grid=(b_pad // tb,),
        in_specs=in_specs,
        # Output last dim == full array dim (= out_dim): no padded writeback,
        # no post-kernel column slice.
        out_specs=pl.BlockSpec((tb, out_dim), lambda i: (i, 0)),
        compiler_params=pltpu.CompilerParams(
            dimension_semantics=("parallel",)),
    )(x_in, *flat_params)

    return out if b_pad == B else out[:B]


bpnn_forward = jax.jit(_bpnn_forward_impl)


# -----------------------------------------------------------------------------
# Reference (pure JAX f32, unpadded) for sanity checking
# -----------------------------------------------------------------------------
def bpnn_reference(params, x):
    h = x
    n_layers = len(params)
    for idx, (w, b) in enumerate(params):
        h = h @ w.T + b
        if idx != n_layers - 1:
            h = 1.0 / (1.0 + jnp.exp(-h))
    return h


if __name__ == "__main__":
    layer_sizes = (16, 32, 32, 8)   # input 16, two hidden of 32, output 8
    batch = 8

    key = jax.random.PRNGKey(0)
    key, kx = jax.random.split(key)
    x = jax.random.normal(kx, (batch, layer_sizes[0]), jnp.float32)

    params = init_params(layer_sizes, key)
    prepped = prepare_params(params)    # one-time transpose + bf16 + hidden pad

    out = bpnn_forward(prepped, x)
    out = jax.block_until_ready(out)

    ref = bpnn_reference(params, x)
    assert out.shape == (batch, layer_sizes[-1])
    # bf16 matmul operands -> loosened tolerance vs. the f32 reference.
    assert jnp.allclose(out, ref, atol=3e-2, rtol=3e-2), "mismatch vs reference"

    print("KERNEL_OK")
</pallas_src>

<mosaic_0001>
module attributes {stable_mosaic.version = 11 : i64} {
  func.func @_mlp_kernel(%arg0: i32, %arg1: memref<8x16xf32, #tpu.memory_space<vmem>>, %arg2: memref<16x128xbf16, #tpu.memory_space<vmem>>, %arg3: memref<1x128xf32, #tpu.memory_space<vmem>>, %arg4: memref<128x128xbf16, #tpu.memory_space<vmem>>, %arg5: memref<1x128xf32, #tpu.memory_space<vmem>>, %arg6: memref<128x8xbf16, #tpu.memory_space<vmem>>, %arg7: memref<1x8xf32, #tpu.memory_space<vmem>>, %arg8: memref<8x8xf32, #tpu.memory_space<vmem>>) attributes {dimension_semantics = [#tpu.dimension_semantics<parallel>], iteration_bounds = array<i64: 1>, scalar_prefetch = 0 : i64, scratch_operands = 0 : i64, tpu.core_type = #tpu.core_type<tc>, window_params = [{transform_indices = @transform_0, window_bounds = array<i64: 8, 16>}, {pipeline_mode = #tpu.pipeline_mode<synchronous>, transform_indices = @transform_1, window_bounds = array<i64: 16, 128>}, {pipeline_mode = #tpu.pipeline_mode<synchronous>, transform_indices = @transform_2, window_bounds = array<i64: 1, 128>}, {pipeline_mode = #tpu.pipeline_mode<synchronous>, transform_indices = @transform_3, window_bounds = array<i64: 128, 128>}, {pipeline_mode = #tpu.pipeline_mode<synchronous>, transform_indices = @transform_4, window_bounds = array<i64: 1, 128>}, {pipeline_mode = #tpu.pipeline_mode<synchronous>, transform_indices = @transform_5, window_bounds = array<i64: 128, 8>}, {pipeline_mode = #tpu.pipeline_mode<synchronous>, transform_indices = @transform_6, window_bounds = array<i64: 1, 8>}, {transform_indices = @transform_7, window_bounds = array<i64: 8, 8>}]} {
    %c0 = arith.constant 0 : index
    %c0_0 = arith.constant 0 : index
    %0 = vector.load %arg1[%c0, %c0_0] : memref<8x16xf32, #tpu.memory_space<vmem>>, vector<8x16xf32>
    %c0_1 = arith.constant 0 : index
    %c0_2 = arith.constant 0 : index
    %1 = vector.load %arg2[%c0_1, %c0_2] : memref<16x128xbf16, #tpu.memory_space<vmem>>, vector<16x128xbf16>
    %c0_3 = arith.constant 0 : index
    %c0_4 = arith.constant 0 : index
    %2 = vector.load %arg3[%c0_3, %c0_4] : memref<1x128xf32, #tpu.memory_space<vmem>>, vector<1x128xf32>
    %3 = arith.truncf %0 : vector<8x16xf32> to vector<8x16xbf16>
    %cst = arith.constant dense<0.000000e+00> : vector<8x128xf32>
    %4 = tpu.matmul %3, %1, %cst {dimension_numbers = #tpu.dot_dimension_numbers<[1], [0], [0], [1], [0, 0, 1, 1], [], []>} : vector<8x16xbf16>, vector<16x128xbf16>, vector<8x128xf32> -> vector<8x128xf32>
    %5 = vector.broadcast %2 : vector<1x128xf32> to vector<8x128xf32>
    %6 = arith.addf %4, %5 : vector<8x128xf32>
    %cst_5 = arith.constant 5.000000e-01 : f32
    %7 = vector.broadcast %cst_5 : f32 to vector<8x128xf32>
    %8 = arith.mulf %7, %6 : vector<8x128xf32>
    %9 = math.tanh %8 : vector<8x128xf32>
    %cst_6 = arith.constant 5.000000e-01 : f32
    %10 = vector.broadcast %cst_6 : f32 to vector<8x128xf32>
    %11 = arith.mulf %10, %9 : vector<8x128xf32>
    %cst_7 = arith.constant 5.000000e-01 : f32
    %12 = vector.broadcast %cst_7 : f32 to vector<8x128xf32>
    %13 = arith.addf %11, %12 : vector<8x128xf32>
    %c0_8 = arith.constant 0 : index
    %c0_9 = arith.constant 0 : index
    %14 = vector.load %arg4[%c0_8, %c0_9] : memref<128x128xbf16, #tpu.memory_space<vmem>>, vector<128x128xbf16>
    %c0_10 = arith.constant 0 : index
    %c0_11 = arith.constant 0 : index
    %15 = vector.load %arg5[%c0_10, %c0_11] : memref<1x128xf32, #tpu.memory_space<vmem>>, vector<1x128xf32>
    %16 = arith.truncf %13 : vector<8x128xf32> to vector<8x128xbf16>
    %cst_12 = arith.constant dense<0.000000e+00> : vector<8x128xf32>
    %17 = tpu.matmul %16, %14, %cst_12 {dimension_numbers = #tpu.dot_dimension_numbers<[1], [0], [0], [1], [0, 0, 1, 1], [], []>} : vector<8x128xbf16>, vector<128x128xbf16>, vector<8x128xf32> -> vector<8x128xf32>
    %18 = vector.broadcast %15 : vector<1x128xf32> to vector<8x128xf32>
    %19 = arith.addf %17, %18 : vector<8x128xf32>
    %cst_13 = arith.constant 5.000000e-01 : f32
    %20 = vector.broadcast %cst_13 : f32 to vector<8x128xf32>
    %21 = arith.mulf %20, %19 : vector<8x128xf32>
    %22 = math.tanh %21 : vector<8x128xf32>
    %cst_14 = arith.constant 5.000000e-01 : f32
    %23 = vector.broadcast %cst_14 : f32 to vector<8x128xf32>
    %24 = arith.mulf %23, %22 : vector<8x128xf32>
    %cst_15 = arith.constant 5.000000e-01 : f32
    %25 = vector.broadcast %cst_15 : f32 to vector<8x128xf32>
    %26 = arith.addf %24, %25 : vector<8x128xf32>
    %c0_16 = arith.constant 0 : index
    %c0_17 = arith.constant 0 : index
    %27 = vector.load %arg6[%c0_16, %c0_17] : memref<128x8xbf16, #tpu.memory_space<vmem>>, vector<128x8xbf16>
    %c0_18 = arith.constant 0 : index
    %c0_19 = arith.constant 0 : index
    %28 = vector.load %arg7[%c0_18, %c0_19] : memref<1x8xf32, #tpu.memory_space<vmem>>, vector<1x8xf32>
    %29 = arith.truncf %26 : vector<8x128xf32> to vector<8x128xbf16>
    %cst_20 = arith.constant dense<0.000000e+00> : vector<8x8xf32>
    %30 = tpu.matmul %29, %27, %cst_20 {dimension_numbers = #tpu.dot_dimension_numbers<[1], [0], [0], [1], [0, 0, 1, 1], [], []>} : vector<8x128xbf16>, vector<128x8xbf16>, vector<8x8xf32> -> vector<8x8xf32>
    %31 = vector.broadcast %28 : vector<1x8xf32> to vector<8x8xf32>
    %32 = arith.addf %30, %31 : vector<8x8xf32>
    %c0_21 = arith.constant 0 : index
    %c0_22 = arith.constant 0 : index
    %33 = vector.load %arg8[%c0_21, %c0_22] : memref<8x8xf32, #tpu.memory_space<vmem>>, vector<8x8xf32>
    tpu.vector_store %arg8[%c0_21, %c0_22], %32 {strides = array<i32>} : memref<8x8xf32, #tpu.memory_space<vmem>>, vector<8x8xf32>,
    return
  }
  func.func @transform_0(%arg0: i32) -> (i32, i32) {
    %c0_i32 = arith.constant 0 : i32
    %c0_i32_0 = arith.constant 0 : i32
    return %arg0, %c0_i32 : i32, i32
  }
  func.func @transform_1(%arg0: i32) -> (i32, i32) {
    %c0_i32 = arith.constant 0 : i32
    %c0_i32_0 = arith.constant 0 : i32
    %c0_i32_1 = arith.constant 0 : i32
    return %c0_i32, %c0_i32_0 : i32, i32
  }
  func.func @transform_2(%arg0: i32) -> (i32, i32) {
    %c0_i32 = arith.constant 0 : i32
    %c0_i32_0 = arith.constant 0 : i32
    %c0_i32_1 = arith.constant 0 : i32
    return %c0_i32, %c0_i32_0 : i32, i32
  }
  func.func @transform_3(%arg0: i32) -> (i32, i32) {
    %c0_i32 = arith.constant 0 : i32
    %c0_i32_0 = arith.constant 0 : i32
    %c0_i32_1 = arith.constant 0 : i32
    return %c0_i32, %c0_i32_0 : i32, i32
  }
  func.func @transform_4(%arg0: i32) -> (i32, i32) {
    %c0_i32 = arith.constant 0 : i32
    %c0_i32_0 = arith.constant 0 : i32
    %c0_i32_1 = arith.constant 0 : i32
    return %c0_i32, %c0_i32_0 : i32, i32
  }
  func.func @transform_5(%arg0: i32) -> (i32, i32) {
    %c0_i32 = arith.constant 0 : i32
    %c0_i32_0 = arith.constant 0 : i32
    %c0_i32_1 = arith.constant 0 : i32
    return %c0_i32, %c0_i32_0 : i32, i32
  }
  func.func @transform_6(%arg0: i32) -> (i32, i32) {
    %c0_i32 = arith.constant 0 : i32
    %c0_i32_0 = arith.constant 0 : i32
    %c0_i32_1 = arith.constant 0 : i32
    return %c0_i32, %c0_i32_0 : i32, i32
  }
  func.func @transform_7(%arg0: i32) -> (i32, i32) {
    %c0_i32 = arith.constant 0 : i32
    %c0_i32_0 = arith.constant 0 : i32
    return %arg0, %c0_i32 : i32, i32
  }
}

</mosaic_0001>

<llo_original>
// kernel: _bpnn_forward_impl.1
$region0: #{_bpnn_forward_impl.1}
  #allocation0 [shape = 'u32[]', space=smem, size = 0x4, offset = 0x4, fixed_abs, tag = 'smem constant byte address 0x4 - core index']
  #allocation1 [shape = 'u32[144,128]{1,0:T(1,128)}', space=vmem, size = 0x12000, scoped, tag = 'internal scratch']
  %s0 = inlined_call_operand.vmem [shape: f32[8,16], index: 0, kind: input, shape index: {}]
  %s1 = inlined_call_operand.hbm [shape: bf16[16,128], index: 1, kind: input, shape index: {}]
  %s2 = inlined_call_operand.vmem [shape: f32[1,128], index: 2, kind: input, shape index: {}]
  %s3 = inlined_call_operand.vmem [shape: bf16[128,128], index: 3, kind: input, shape index: {}]
  %s4 = inlined_call_operand.hbm [shape: f32[1,128], index: 4, kind: input, shape index: {}]
  %s5 = inlined_call_operand.vmem [shape: bf16[128,8], index: 5, kind: input, shape index: {}]
  %s6 = inlined_call_operand.vmem [shape: f32[1,8], index: 6, kind: input, shape index: {}]
  %s7 = inlined_call_operand.hbm [shape: f32[8,8], index: 7, kind: output, shape index: {}]
  %s8 = sld [smem:[#allocation0]]
  $region46: #{_bpnn_forward_impl.1} parent=0
    _
  %s10 = ssub.s32 1, %s8
  %s11 = scalar_select 0, %s10, %s8
  $region1: #{_bpnn_forward_impl.1} parent=0
    #allocation2 [shape = 'u8[4096]{0}', space=vmem, size = 0x1000, scoped, tag = 'input window, operand 1, single buffered']
    #allocation3 [shape = 's32[1]{0}', space=sflag, size = 0x4, scoped, tag = 'scoped memory for _bpnn_forward_impl.1']
    #allocation4 [shape = 's32[1]{0}', space=sflag, size = 0x4, scoped, tag = 'scoped memory for _bpnn_forward_impl.1']
    #allocation5 [shape = 'u8[512]{0}', space=vmem, size = 0x400, scoped, tag = 'input window, operand 4, single buffered']
    #allocation6 [shape = 's32[1]{0}', space=sflag, size = 0x4, scoped, tag = 'scoped memory for _bpnn_forward_impl.1']
    #allocation7 [shape = 'u8[4096]{0}', space=vmem, size = 0x1000, scoped, tag = 'output window, operand 0, single buffered']
    %12 = vsyncpa [#allocation3], 0
    %13 = vsyncpa [#allocation6], 0
    %14 = vsyncpa [#allocation4], 0
    // Predicated region
    $region2: #{_bpnn_forward_impl.1} parent=1 // pred_check
      _
    $region3: #{_bpnn_forward_impl.1} parent=1 // pred_check_branch
      %16 = sbr.rel (0) target = $region5
    $region4: #{_bpnn_forward_impl.1} parent=1 // pred_region
      _
    $region5: #{_bpnn_forward_impl.1} parent=1 // pred_fallthru
      _
    // Predicated region
    $region6: #{_bpnn_forward_impl.1} parent=1 // pred_check
      _
    $region7: #{_bpnn_forward_impl.1} parent=1 // pred_check_branch
      %18 = sbr.rel (0) target = $region9
    $region8: #{_bpnn_forward_impl.1} parent=1 // pred_region
      %s20 = ssub.s32 128, 128
      %21 = vsyncadd [#allocation3], %s20
      %s22 = sshll.u32 [#allocation2], 4
      %s23 = int_to_ptr.vmem [resolvable:$true] %s22
      %28 = dma.hbm_to_vmem [thread:$0]  %s1, 128, %s23, [#allocation3], 64, 64, 4
    $region9: #{_bpnn_forward_impl.1} parent=1 // pred_fallthru
      _
    // Predicated region
    $region10: #{_bpnn_forward_impl.1} parent=1 // pred_check
      _
    $region11: #{_bpnn_forward_impl.1} parent=1 // pred_check_branch
      %30 = sbr.rel (0) target = $region13
    $region12: #{_bpnn_forward_impl.1} parent=1 // pred_region
      _
    $region13: #{_bpnn_forward_impl.1} parent=1 // pred_fallthru
      _
    // Predicated region
    $region14: #{_bpnn_forward_impl.1} parent=1 // pred_check
      _
    $region15: #{_bpnn_forward_impl.1} parent=1 // pred_check_branch
      %32 = sbr.rel (0) target = $region17
    $region16: #{_bpnn_forward_impl.1} parent=1 // pred_region
      _
    $region17: #{_bpnn_forward_impl.1} parent=1 // pred_fallthru
      _
    // Predicated region
    $region18: #{_bpnn_forward_impl.1} parent=1 // pred_check
      _
    $region19: #{_bpnn_forward_impl.1} parent=1 // pred_check_branch
      %34 = sbr.rel (0) target = $region21
    $region20: #{_bpnn_forward_impl.1} parent=1 // pred_region
      %s36 = ssub.s32 16, 16
      %37 = vsyncadd [#allocation6], %s36
      %s39 = sshll.u32 [#allocation5], 4
      %s40 = int_to_ptr.vmem [resolvable:$true] %s39
      %42 = dma.hbm_to_vmem [thread:$0]  %s4, 16, %s40, [#allocation6]
    $region21: #{_bpnn_forward_impl.1} parent=1 // pred_fallthru
      _
    // Predicated region
    $region22: #{_bpnn_forward_impl.1} parent=1 // pred_check
      _
    $region23: #{_bpnn_forward_impl.1} parent=1 // pred_check_branch
      %44 = sbr.rel (0) target = $region25
    $region24: #{_bpnn_forward_impl.1} parent=1 // pred_region
      _
    $region25: #{_bpnn_forward_impl.1} parent=1 // pred_fallthru
      _
    // Predicated region
    $region26: #{_bpnn_forward_impl.1} parent=1 // pred_check
      _
    $region27: #{_bpnn_forward_impl.1} parent=1 // pred_check_branch
      %46 = sbr.rel (0) target = $region29
    $region28: #{_bpnn_forward_impl.1} parent=1 // pred_region
      _
    $region29: #{_bpnn_forward_impl.1} parent=1 // pred_fallthru
      _
    // Predicated region
    $region30: #{_bpnn_forward_impl.1} parent=1 // pred_check
      _
    $region31: #{_bpnn_forward_impl.1} parent=1 // pred_check_branch
      %48 = sbr.rel (0) target = $region33
    $region32: #{_bpnn_forward_impl.1} parent=1 // pred_region
      %49 = dma.done [#allocation3], 128
    $region33: #{_bpnn_forward_impl.1} parent=1 // pred_fallthru
      _
    // Predicated region
    $region34: #{_bpnn_forward_impl.1} parent=1 // pred_check
      _
    $region35: #{_bpnn_forward_impl.1} parent=1 // pred_check_branch
      %51 = sbr.rel (0) target = $region37
    $region36: #{_bpnn_forward_impl.1} parent=1 // pred_region
      %52 = dma.done [#allocation6], 16
    $region37: #{_bpnn_forward_impl.1} parent=1 // pred_fallthru
      _
    %v54 = vld [vmem:[%s0] sm:$0xff]
    %v55 = vld [vmem:[#allocation2] sm:$0xf]
    %v56 = vld [vmem:[#allocation2 + $0x4] sm:$0xf]
    %v57 = vld [vmem:[%s2] sm:$0x1]
    %v58 = vpack.c.bf16 %v54, %v54
    %v60 = vlaneseq
    %v61 = vshrl.u32 %v60, 7
    %v62 = vsub.s32 0, %v61
    %v63 = vrot.slane %v57, %v62
    %v67 = vunpack.c.l.b16 %v55
    %v68 = vunpack.c.l.b16 %v56
    %v69 = vpack.c.b16 %v68, %v67
    %vm71 = vcmask 130048
    %v73 = vsel %vm71, %v58, 0
    %75 = vmatprep.subr.bf16.mxu0 0
    %76 = vmatpush1.bf16.msra.mxu0 0
    %77 = vmatprep.subr.bf16.mxu0 0
    %78 = vmatpush1.bf16.msra.mxu0 0
    %79 = vmatprep.subr.bf16.mxu0 0
    %80 = vmatpush1.bf16.msra.mxu0 0
    %81 = vmatprep.subr.bf16.mxu0 0
    %82 = vmatpush1.bf16.msra.mxu0 0
    %83 = vmatprep.subr.bf16.mxu0 0
    %84 = vmatpush1.bf16.msra.mxu0 0
    %85 = vmatprep.subr.bf16.mxu0 0
    %86 = vmatpush1.bf16.msra.mxu0 0
    %87 = vmatprep.subr.bf16.mxu0 0
    %88 = vmatpush1.bf16.msra.mxu0 0
    %89 = vmatprep.subr.bf16.mxu0 0
    %90 = vmatpush1.bf16.msra.mxu0 %v69
    %91 = vmatprep.subr.bf16.mxu0 0
    %92 = vmatpush2.bf16.msra.mxu0 0
    %93 = vmatprep.subr.bf16.mxu0 0
    %94 = vmatpush2.bf16.msra.mxu0 0
    %95 = vmatprep.subr.bf16.mxu0 0
    %96 = vmatpush2.bf16.msra.mxu0 0
    %97 = vmatprep.subr.bf16.mxu0 0
    %98 = vmatpush2.bf16.msra.mxu0 0
    %99 = vmatprep.subr.bf16.mxu0 0
    %100 = vmatpush2.bf16.msra.mxu0 0
    %101 = vmatprep.subr.bf16.mxu0 0
    %102 = vmatpush2.bf16.msra.mxu0 0
    %103 = vmatprep.subr.bf16.mxu0 0
    %104 = vmatpush2.bf16.msra.mxu0 0
    %105 = vmatprep.subr.bf16.mxu0 0
    %106 = vmatpush2.bf16.msra.mxu0 0
    %107 = vmatprep.mubr.bf16.mxu0 0
    %108 = vmatmul.mubr.bf16.gmra.mxu0 %v73
    %v109 = vpop.f32.mrf.mxu0
    %v110 = vadd.f32 %v63, %v109
    %v111 = vpop.f32.mrf.mxu0
    %v112 = vpop.f32.mrf.mxu0
    %v113 = vpop.f32.mrf.mxu0
    %114 = vdwg.mxu0
    %v115 = vmul.f32 %v110, 0.5
    %v116 = vtanh.pop %v115
    %v117 = vmul.f32 %v116, 0.5
    %v118 = vadd.f32 %v117, 0.5
    %v119 = vld [vmem:[%s3] sm:$0xf]
    %v120 = vld [vmem:[%s3 + $0x4] sm:$0xf]
    %v121 = vld [vmem:[%s3 + $0x8] sm:$0xf]
    %v122 = vld [vmem:[%s3 + $0xc] sm:$0xf]
    %v123 = vld [vmem:[%s3 + $0x10] sm:$0xf]
    %v124 = vld [vmem:[%s3 + $0x14] sm:$0xf]
    %v125 = vld [vmem:[%s3 + $0x18] sm:$0xf]
    %v126 = vld [vmem:[%s3 + $0x1c] sm:$0xf]
    %v127 = vld [vmem:[%s3 + $0x20] sm:$0xf]
    %v128 = vld [vmem:[%s3 + $0x24] sm:$0xf]
    %v129 = vld [vmem:[%s3 + $0x28] sm:$0xf]
    %v130 = vld [vmem:[%s3 + $0x2c] sm:$0xf]
    %v131 = vld [vmem:[%s3 + $0x30] sm:$0xf]
    %v132 = vld [vmem:[%s3 + $0x34] sm:$0xf]
    %v133 = vld [vmem:[%s3 + $0x38] sm:$0xf]
    %v134 = vld [vmem:[%s3 + $0x3c] sm:$0xf]
    %v135 = vld [vmem:[#allocation5] sm:$0x1]
    %v136 = vpack.c.bf16 %v118, %v118
    %v138 = vlaneseq
    %v139 = vshrl.u32 %v138, 7
    %v140 = vsub.s32 0, %v139
    %v141 = vrot.slane %v135, %v140
    %v159 = vunpack.c.l.b16 %v119
    %v160 = vunpack.c.l.b16 %v120
    %v161 = vunpack.c.l.b16 %v121
    %v162 = vunpack.c.l.b16 %v122
    %v163 = vunpack.c.l.b16 %v123
    %v164 = vunpack.c.l.b16 %v124
    %v165 = vunpack.c.l.b16 %v125
    %v166 = vunpack.c.l.b16 %v126
    %v167 = vunpack.c.l.b16 %v127
    %v168 = vunpack.c.l.b16 %v128
    %v169 = vunpack.c.l.b16 %v129
    %v170 = vunpack.c.l.b16 %v130
    %v171 = vunpack.c.l.b16 %v131
    %v172 = vunpack.c.l.b16 %v132
    %v173 = vunpack.c.l.b16 %v133
    %v174 = vunpack.c.l.b16 %v134
    %v175 = vpack.c.b16 %v160, %v159
    %v176 = vpack.c.b16 %v162, %v161
    %v177 = vpack.c.b16 %v164, %v163
    %v178 = vpack.c.b16 %v166, %v165
    %v179 = vpack.c.b16 %v168, %v167
    %v180 = vpack.c.b16 %v170, %v169
    %v181 = vpack.c.b16 %v172, %v171
    %v182 = vpack.c.b16 %v174, %v173
    %191 = vmatprep.subr.bf16.mxu0 0
    %192 = vmatpush1.bf16.msra.mxu0 %v182
    %193 = vmatprep.subr.bf16.mxu0 0
    %194 = vmatpush1.bf16.msra.mxu0 %v181
    %195 = vmatprep.subr.bf16.mxu0 0
    %196 = vmatpush1.bf16.msra.mxu0 %v180
    %197 = vmatprep.subr.bf16.mxu0 0
    %198 = vmatpush1.bf16.msra.mxu0 %v179
    %199 = vmatprep.subr.bf16.mxu0 0
    %200 = vmatpush1.bf16.msra.mxu0 %v178
    %201 = vmatprep.subr.bf16.mxu0 0
    %202 = vmatpush1.bf16.msra.mxu0 %v177
    %203 = vmatprep.subr.bf16.mxu0 0
    %204 = vmatpush1.bf16.msra.mxu0 %v176
    %205 = vmatprep.subr.bf16.mxu0 0
    %206 = vmatpush1.bf16.msra.mxu0 %v175
    %207 = vmatprep.subr.bf16.mxu0 0
    %208 = vmatpush2.bf16.msra.mxu0 0
    %209 = vmatprep.subr.bf16.mxu0 0
    %210 = vmatpush2.bf16.msra.mxu0 0
    %211 = vmatprep.subr.bf16.mxu0 0
    %212 = vmatpush2.bf16.msra.mxu0 0
    %213 = vmatprep.subr.bf16.mxu0 0
    %214 = vmatpush2.bf16.msra.mxu0 0
    %215 = vmatprep.subr.bf16.mxu0 0
    %216 = vmatpush2.bf16.msra.mxu0 0
    %217 = vmatprep.subr.bf16.mxu0 0
    %218 = vmatpush2.bf16.msra.mxu0 0
    %219 = vmatprep.subr.bf16.mxu0 0
    %220 = vmatpush2.bf16.msra.mxu0 0
    %221 = vmatprep.subr.bf16.mxu0 0
    %222 = vmatpush2.bf16.msra.mxu0 0
    %223 = vmatprep.mubr.bf16.mxu0 0
    %224 = vmatmul.mubr.bf16.gmra.mxu0 %v136
    %v225 = vpop.f32.mrf.mxu0
    %v226 = vadd.f32 %v141, %v225
    %v227 = vpop.f32.mrf.mxu0
    %v228 = vpop.f32.mrf.mxu0
    %v229 = vpop.f32.mrf.mxu0
    %230 = vdwg.mxu0
    %v231 = vmul.f32 %v226, 0.5
    %v232 = vtanh.pop %v231
    %v233 = vmul.f32 %v232, 0.5
    %v234 = vadd.f32 %v233, 0.5
    %v235 = vld [vmem:[%s5] sm:$0xf]
    %v236 = vld [vmem:[%s5 + $0x4] sm:$0xf]
    %v237 = vld [vmem:[%s5 + $0x8] sm:$0xf]
    %v238 = vld [vmem:[%s5 + $0xc] sm:$0xf]
    %v239 = vld [vmem:[%s5 + $0x10] sm:$0xf]
    %v240 = vld [vmem:[%s5 + $0x14] sm:$0xf]
    %v241 = vld [vmem:[%s5 + $0x18] sm:$0xf]
    %v242 = vld [vmem:[%s5 + $0x1c] sm:$0xf]
    %v243 = vld [vmem:[%s5 + $0x20] sm:$0xf]
    %v244 = vld [vmem:[%s5 + $0x24] sm:$0xf]
    %v245 = vld [vmem:[%s5 + $0x28] sm:$0xf]
    %v246 = vld [vmem:[%s5 + $0x2c] sm:$0xf]
    %v247 = vld [vmem:[%s5 + $0x30] sm:$0xf]
    %v248 = vld [vmem:[%s5 + $0x34] sm:$0xf]
    %v249 = vld [vmem:[%s5 + $0x38] sm:$0xf]
    %v250 = vld [vmem:[%s5 + $0x3c] sm:$0xf]
    %v251 = vld [vmem:[%s6] sm:$0x1]
    %v252 = vpack.c.bf16 %v234, %v234
    %v254 = vlaneseq
    %v255 = vshrl.u32 %v254, 7
    %v256 = vsub.s32 0, %v255
    %v257 = vrot.slane %v251, %v256
    %v275 = vunpack.c.l.b16 %v235
    %v276 = vunpack.c.l.b16 %v236
    %v277 = vunpack.c.l.b16 %v237
    %v278 = vunpack.c.l.b16 %v238
    %v279 = vunpack.c.l.b16 %v239
    %v280 = vunpack.c.l.b16 %v240
    %v281 = vunpack.c.l.b16 %v241
    %v282 = vunpack.c.l.b16 %v242
    %v283 = vunpack.c.l.b16 %v243
    %v284 = vunpack.c.l.b16 %v244
    %v285 = vunpack.c.l.b16 %v245
    %v286 = vunpack.c.l.b16 %v246
    %v287 = vunpack.c.l.b16 %v247
    %v288 = vunpack.c.l.b16 %v248
    %v289 = vunpack.c.l.b16 %v249
    %v290 = vunpack.c.l.b16 %v250
    %v291 = vpack.c.b16 %v276, %v275
    %v292 = vpack.c.b16 %v278, %v277
    %v293 = vpack.c.b16 %v280, %v279
    %v294 = vpack.c.b16 %v282, %v281
    %v295 = vpack.c.b16 %v284, %v283
    %v296 = vpack.c.b16 %v286, %v285
    %v297 = vpack.c.b16 %v288, %v287
    %v298 = vpack.c.b16 %v290, %v289
    %307 = vmatprep.subr.bf16.mxu0 0
    %308 = vmatpush1.bf16.msra.mxu0 %v298
    %309 = vmatprep.subr.bf16.mxu0 0
    %310 = vmatpush1.bf16.msra.mxu0 %v297
    %311 = vmatprep.subr.bf16.mxu0 0
    %312 = vmatpush1.bf16.msra.mxu0 %v296
    %313 = vmatprep.subr.bf16.mxu0 0
    %314 = vmatpush1.bf16.msra.mxu0 %v295
    %315 = vmatprep.subr.bf16.mxu0 0
    %316 = vmatpush1.bf16.msra.mxu0 %v294
    %317 = vmatprep.subr.bf16.mxu0 0
    %318 = vmatpush1.bf16.msra.mxu0 %v293
    %319 = vmatprep.subr.bf16.mxu0 0
    %320 = vmatpush1.bf16.msra.mxu0 %v292
    %321 = vmatprep.subr.bf16.mxu0 0
    %322 = vmatpush1.bf16.msra.mxu0 %v291
    %323 = vmatprep.subr.bf16.mxu0 0
    %324 = vmatpush2.bf16.msra.mxu0 0
    %325 = vmatprep.subr.bf16.mxu0 0
    %326 = vmatpush2.bf16.msra.mxu0 0
    %327 = vmatprep.subr.bf16.mxu0 0
    %328 = vmatpush2.bf16.msra.mxu0 0
    %329 = vmatprep.subr.bf16.mxu0 0
    %330 = vmatpush2.bf16.msra.mxu0 0
    %331 = vmatprep.subr.bf16.mxu0 0
    %332 = vmatpush2.bf16.msra.mxu0 0
    %333 = vmatprep.subr.bf16.mxu0 0
    %334 = vmatpush2.bf16.msra.mxu0 0
    %335 = vmatprep.subr.bf16.mxu0 0
    %336 = vmatpush2.bf16.msra.mxu0 0
    %337 = vmatprep.subr.bf16.mxu0 0
    %338 = vmatpush2.bf16.msra.mxu0 0
    %339 = vmatprep.mubr.bf16.mxu0 0
    %340 = vmatmul.mubr.bf16.gmra.mxu0 %v252
    %v341 = vpop.f32.mrf.mxu0
    %v342 = vadd.f32 %v257, %v341
    %v343 = vpop.f32.mrf.mxu0
    %v344 = vpop.f32.mrf.mxu0
    %v345 = vpop.f32.mrf.mxu0
    %346 = vdwg.mxu0
    %vm347 = vcmask 64512
    %348 = vst.msk [vmem:[#allocation7] sm:$0xff] %vm347, %v342
    // Predicated region
    $region38: #{_bpnn_forward_impl.1} parent=1 // pred_check
      _
    $region39: #{_bpnn_forward_impl.1} parent=1 // pred_check_branch
      %350 = sbr.rel (0) target = $region41
    $region40: #{_bpnn_forward_impl.1} parent=1 // pred_region
      %s352 = ssub.s32 128, 128
      %353 = vsyncadd [#allocation4], %s352
      %s355 = sshll.u32 [#allocation7], 4
      %s356 = int_to_ptr.vmem [resolvable:$true] %s355
      %358 = dma.vmem_to_hbm [thread:$0]  %s356, 128, %s7, [#allocation4]
    $region41: #{_bpnn_forward_impl.1} parent=1 // pred_fallthru
      _
    // Predicated region
    $region42: #{_bpnn_forward_impl.1} parent=1 // pred_check
      _
    $region43: #{_bpnn_forward_impl.1} parent=1 // pred_check_branch
      %360 = sbr.rel (0) target = $region45
    $region44: #{_bpnn_forward_impl.1} parent=1 // pred_region
      %361 = dma.done [#allocation4], 128
    $region45: #{_bpnn_forward_impl.1} parent=1 // pred_fallthru
      _
    %362 = vsyncpa [#allocation3], 1
    %363 = vsyncpa [#allocation6], 1
    %364 = vsyncpa [#allocation4], 1

</llo_original>
